<compile_context>
chip_gen: v5e
topology: v5e:2x2
jax: 0.10.0
libtpu: 0.0.40
codegen_flags: <defaults>
</compile_context>

<pallas_src>
import numpy as np

import jax
import jax.numpy as jnp
from jax.experimental import pallas as pl
from jax.experimental.pallas import tpu as pltpu


# ----------------------------------------------------------------------------- host helpers
def _dft_factors(n: int, dtype):
    """Real, imag and (real+imag) parts of the unnormalized N-point DFT matrix.

    The phase k*m is reduced mod N exactly (int64) and evaluated in float64 before the
    cast, so bf16/f32 storage does not corrupt the phase for large N.
    """
    k = np.arange(n, dtype=np.int64)
    km = (np.outer(k, k) % n).astype(np.float64)
    phase = (-2.0 * np.pi / n) * km
    fr = np.cos(phase)
    fi = np.sin(phase)
    fs = fr + fi  # precomputed sum for the 3-mult (Gauss/Karatsuba) complex matmul
    to = lambda a: jnp.asarray(a.astype(np.float32), dtype=dtype)
    return to(fr), to(fi), to(fs)


def _vmem_capacity_bytes() -> int:
    try:
        return int(pltpu.get_tpu_info().vmem_capacity_bytes)
    except Exception:
        return 64 * 1024 * 1024  # conservative (v7x)


def _pick_batch_tile(bc: int, h: int, w: int, mat_bytes: int, vmem_cap: int) -> int:
    """Largest batch tile (images per grid step) whose working set fits VMEM."""
    if h % 8 != 0:
        # Single grid step: block == full array dims is always a legal BlockSpec.
        return max(bc, 1)
    dft = 3 * (h * h + w * w) * mat_bytes * 2          # constant blocks, double-buffered
    for bt in (8, 4, 2, 1):
        bt = max(1, min(bt, bc))
        io = 2 * 4 * bt * h * w * 4                    # double-buffered f32 xr/xi/yr/yi
        work = 12 * bt * h * w * 4                     # live f32 temporaries (generous)
        if dft + io + work + (4 << 20) <= int(0.7 * vmem_cap):
            return bt
    return 1


# --------------------------------------------------------------------------------- kernel
def _make_fft2_kernel(b_tile: int, h: int, w: int):
    """2-D DFT kernel over a (b_tile*h, w) block of real/imag f32 planes."""

    def kernel(xr_ref, xi_ref,
               fhr_ref, fhi_ref, fhs_ref,
               fwr_ref, fwi_ref, fws_ref,
               yr_ref, yi_ref):
        cdt = fwr_ref.dtype                 # MXU input dtype (bf16 or f32)

        xr = xr_ref[...]                    # (b_tile*h, w) f32
        xi = xi_ref[...]

        # ---- Stage A: W-axis DFT, batch folded into the MXU M dim (one 2-D matmul). ----
        # Gauss 3-mult complex product with short live ranges: form (p1-p2) and (p1+p2)
        # before issuing the third matmul so p1/p2 are dropped early.
        p1 = jnp.dot(xr.astype(cdt), fwr_ref[...], preferred_element_type=jnp.float32)
        p2 = jnp.dot(xi.astype(cdt), fwi_ref[...], preferred_element_type=jnp.float32)
        tr = p1 - p2                        # Re(X @ F_W), f32
        d = p1 + p2
        xs = (xr + xi).astype(cdt)          # sum in f32, cast once
        p3 = jnp.dot(xs, fws_ref[...], preferred_element_type=jnp.float32)
        ti = p3 - d                         # Im(X @ F_W), f32

        # ---- Stage B: H-axis DFT, per image in the batch tile (static short loop). ----
        fhr = fhr_ref[...]
        fhi = fhi_ref[...]
        fhs = fhs_ref[...]
        for b in range(b_tile):
            r0, r1 = b * h, (b + 1) * h
            tr_b = tr[r0:r1, :]
            ti_b = ti[r0:r1, :]
            q1 = jnp.dot(fhr, tr_b.astype(cdt), preferred_element_type=jnp.float32)
            q2 = jnp.dot(fhi, ti_b.astype(cdt), preferred_element_type=jnp.float32)
            yr_ref[r0:r1, :] = (q1 - q2).astype(yr_ref.dtype)     # store Re immediately
            dq = q1 + q2
            q3 = jnp.dot(fhs, (tr_b + ti_b).astype(cdt),
                         preferred_element_type=jnp.float32)
            yi_ref[r0:r1, :] = (q3 - dq).astype(yi_ref.dtype)     # store Im immediately

    return kernel


# -------------------------------------------------------------------------------- wrappers
def pallas_fft2(xr2d, xi2d, h: int, w: int, *, use_bf16: bool = True):
    """Unnormalized 2-D DFT of (BC, H, W) fields given as flattened (BC*H, W) planes.

    Returns (yr, yi) float32 (BC*H, W) planes of Y = F_H @ (xr + i*xi) @ F_W per image.
    """
    rows, w_in = xr2d.shape
    assert w_in == w and rows % h == 0
    bc = rows // h

    cdt = jnp.bfloat16 if use_bf16 else jnp.float32
    mat_bytes = 2 if use_bf16 else 4
    cap = _vmem_capacity_bytes()
    bt = _pick_batch_tile(bc, h, w, mat_bytes, cap)

    pad_bc = (-bc) % bt
    if pad_bc:
        xr2d = jnp.pad(xr2d, ((0, pad_bc * h), (0, 0)))
        xi2d = jnp.pad(xi2d, ((0, pad_bc * h), (0, 0)))
    bc_p = bc + pad_bc
    grid = (bc_p // bt,)

    fhr, fhi, fhs = _dft_factors(h, cdt)
    fwr, fwi, fws = _dft_factors(w, cdt)

    field_in_spec = pl.BlockSpec((bt * h, w), lambda i: (i, 0))
    field_out_spec = pl.BlockSpec((bt * h, w), lambda i: (i, 0))
    const_spec = lambda n: pl.BlockSpec((n, n), lambda i: (0, 0))   # DMA'd once, reused

    # VMEM budget: double-buffered DFT-matrix blocks + double-buffered f32 field blocks +
    # live f32 temporaries, with headroom; clamped to chip capacity.
    dft_bytes = 3 * (h * h + w * w) * mat_bytes * 2
    io_bytes = 2 * 4 * bt * h * w * 4
    work_bytes = 12 * bt * h * w * 4
    vmem_limit = int(min(max(dft_bytes + io_bytes + work_bytes + (8 << 20), 32 << 20),
                         cap - (8 << 20), 100 << 20))

    cost = pl.CostEstimate(
        flops=int(6 * bc_p * h * w * (h + w)),              # 3+3 real matmuls per image
        transcendentals=0,
        bytes_accessed=int(16 * bc_p * h * w               # f32 field in + out
                           + 3 * (h * h + w * w) * mat_bytes),
    )

    out_struct = jax.ShapeDtypeStruct((bc_p * h, w), jnp.float32)
    fn = pl.pallas_call(
        _make_fft2_kernel(bt, h, w),
        grid=grid,
        in_specs=[
            field_in_spec, field_in_spec,
            const_spec(h), const_spec(h), const_spec(h),
            const_spec(w), const_spec(w), const_spec(w),
        ],
        out_specs=(field_out_spec, field_out_spec),
        out_shape=(out_struct, out_struct),
        compiler_params=pltpu.CompilerParams(
            dimension_semantics=("parallel",),   # batch-tile axis; independent per step
            vmem_limit_bytes=vmem_limit,
        ),
        cost_estimate=cost,
    )
    yr, yi = fn(xr2d, xi2d, fhr, fhi, fhs, fwr, fwi, fws)
    if pad_bc:
        yr = yr[: bc * h]
        yi = yi[: bc * h]
    return yr, yi


def fraunhofer_prop(field_data, wavelengths, spacing, z, *, use_bf16: bool = True):
    """Pallas TPU equivalent of Fraunhofer_Prop.forward.

    Args:
      field_data: complex (B, C, H, W) field (ElectricField.data).
      wavelengths: (C,) wavelengths (ElectricField.wavelengths).
      spacing: (dx, dy) input pixel pitch.
      z: propagation distance (only affects the output pixel pitch).

    Returns:
      (out_field, target_dxy): complex64 (B, C, H, W) propagated field and the output
      pixel pitch (stands in for ElectricField(data=..., spacing=target_dxy)).
    """
    b, c, h, w = field_data.shape
    dx, dy = float(spacing[0]), float(spacing[1])
    wl = np.asarray(wavelengths, dtype=np.float64).reshape(-1)

    length_x = h * dx
    length_y = w * dy
    dx_after = wl * float(z) / length_x
    dy_after = wl * float(z) / length_y
    min_dx = float(dx_after.min())
    min_dy = float(dy_after.min())
    target_dxy = min(min_dx, min_dy)

    # scale_factor = min_dx/target if min_dx <= min_dy else min_dy/target -> 1.0 exactly
    # by construction (guard 0/0 when z == 0).
    if target_dxy > 0.0:
        scale = (min_dx / target_dxy) if min_dx <= min_dy else (min_dy / target_dxy)
    else:
        scale = 1.0
    if not np.isfinite(scale):
        scale = 1.0

    # TODO(synk): bitcast complex64 -> packed f32 and deinterleave in-kernel to remove
    # these wrapper-side HBM passes (only matters in the HBM-bound small-H,W regime).
    xr = jnp.real(field_data).astype(jnp.float32).reshape(b * c * h, w)
    xi = jnp.imag(field_data).astype(jnp.float32).reshape(b * c * h, w)

    yr, yi = pallas_fft2(xr, xi, h, w, use_bf16=use_bf16)
    out = (yr + 1j * yi).reshape(b, c, h, w)

    if scale != 1.0:
        # TODO(synk): dead by construction (scale == 1.0); torch-bilinear parity of
        # jax.image.resize is not guaranteed if this branch is ever exercised.
        new_h, new_w = int(round(h * scale)), int(round(w * scale))
        out = (jax.image.resize(jnp.real(out), (b, c, new_h, new_w), method="bilinear")
               + 1j * jax.image.resize(jnp.imag(out), (b, c, new_h, new_w), method="bilinear"))
    # else: identity bilinear resample skipped entirely (no HBM round trip).

    return out, target_dxy


# ----------------------------------------------------------------------------------- demo
if __name__ == "__main__":
    key = jax.random.PRNGKey(0)
    B, C, H, W = 2, 4, 16, 16
    k_re, k_im = jax.random.split(key)
    real = jax.random.normal(k_re, (B, C, H, W), dtype=jnp.float32)
    imag = jax.random.normal(k_im, (B, C, H, W), dtype=jnp.float32)
    field = real + 1j * imag                                  # complex64 ElectricField.data

    wavelengths = np.array([450e-9, 520e-9, 638e-9, 700e-9])  # one per channel
    spacing = (8e-6, 8e-6)
    z = 0.1

    # Default bf16-MXU path.
    out_bf16, target_dxy = fraunhofer_prop(field, wavelengths, spacing, z, use_bf16=True)
    out_bf16 = jax.block_until_ready(out_bf16)

    # f32 accuracy path.
    out_f32, _ = fraunhofer_prop(field, wavelengths, spacing, z, use_bf16=False)
    out_f32 = jax.block_until_ready(out_f32)

    # Reference: torch.fft.fft2 is unnormalized; jnp.fft.fft2 uses the same convention,
    # and the bilinear-resample step is an exact identity here (scale_factor == 1.0).
    ref = jnp.fft.fft2(field)
    ref_norm = float(jnp.linalg.norm(ref))
    err_bf16 = float(jnp.linalg.norm(out_bf16 - ref)) / ref_norm
    err_f32 = float(jnp.linalg.norm(out_f32 - ref)) / ref_norm
    assert err_bf16 < 5e-2, f"bf16 path mismatch vs fft2: rel err {err_bf16:.3e}"
    assert err_f32 < 2e-2, f"f32 path mismatch vs fft2: rel err {err_f32:.3e}"
    assert np.isclose(target_dxy, float(wavelengths.min()) * z / (H * spacing[0]))

    print("KERNEL_OK")
</pallas_src>

<mosaic_0001>
module attributes {stable_mosaic.version = 11 : i64} {
  func.func @kernel(%arg0: i32, %arg1: memref<128x16xf32, #tpu.memory_space<vmem>>, %arg2: memref<128x16xf32, #tpu.memory_space<vmem>>, %arg3: memref<16x16xbf16, #tpu.memory_space<vmem>>, %arg4: memref<16x16xbf16, #tpu.memory_space<vmem>>, %arg5: memref<16x16xbf16, #tpu.memory_space<vmem>>, %arg6: memref<16x16xbf16, #tpu.memory_space<vmem>>, %arg7: memref<16x16xbf16, #tpu.memory_space<vmem>>, %arg8: memref<16x16xbf16, #tpu.memory_space<vmem>>, %arg9: memref<128x16xf32, #tpu.memory_space<vmem>>, %arg10: memref<128x16xf32, #tpu.memory_space<vmem>>) attributes {dimension_semantics = [#tpu.dimension_semantics<parallel>], iteration_bounds = array<i64: 1>, scalar_prefetch = 0 : i64, scratch_operands = 0 : i64, tpu.core_type = #tpu.core_type<tc>, window_params = [{transform_indices = @transform_0, window_bounds = array<i64: 128, 16>}, {transform_indices = @transform_1, window_bounds = array<i64: 128, 16>}, {pipeline_mode = #tpu.pipeline_mode<synchronous>, transform_indices = @transform_2, window_bounds = array<i64: 16, 16>}, {pipeline_mode = #tpu.pipeline_mode<synchronous>, transform_indices = @transform_3, window_bounds = array<i64: 16, 16>}, {pipeline_mode = #tpu.pipeline_mode<synchronous>, transform_indices = @transform_4, window_bounds = array<i64: 16, 16>}, {pipeline_mode = #tpu.pipeline_mode<synchronous>, transform_indices = @transform_5, window_bounds = array<i64: 16, 16>}, {pipeline_mode = #tpu.pipeline_mode<synchronous>, transform_indices = @transform_6, window_bounds = array<i64: 16, 16>}, {pipeline_mode = #tpu.pipeline_mode<synchronous>, transform_indices = @transform_7, window_bounds = array<i64: 16, 16>}, {transform_indices = @transform_8, window_bounds = array<i64: 128, 16>}, {transform_indices = @transform_9, window_bounds = array<i64: 128, 16>}]} {
    %c0 = arith.constant 0 : index
    %c0_0 = arith.constant 0 : index
    %0 = vector.load %arg1[%c0, %c0_0] : memref<128x16xf32, #tpu.memory_space<vmem>>, vector<128x16xf32>
    %c0_1 = arith.constant 0 : index
    %c0_2 = arith.constant 0 : index
    %1 = vector.load %arg2[%c0_1, %c0_2] : memref<128x16xf32, #tpu.memory_space<vmem>>, vector<128x16xf32>
    %2 = arith.truncf %0 : vector<128x16xf32> to vector<128x16xbf16>
    %c0_3 = arith.constant 0 : index
    %c0_4 = arith.constant 0 : index
    %3 = vector.load %arg6[%c0_3, %c0_4] : memref<16x16xbf16, #tpu.memory_space<vmem>>, vector<16x16xbf16>
    %cst = arith.constant dense<0.000000e+00> : vector<128x16xf32>
    %4 = tpu.matmul %2, %3, %cst {dimension_numbers = #tpu.dot_dimension_numbers<[1], [0], [0], [1], [0, 0, 1, 1], [], []>} : vector<128x16xbf16>, vector<16x16xbf16>, vector<128x16xf32> -> vector<128x16xf32>
    %5 = arith.truncf %1 : vector<128x16xf32> to vector<128x16xbf16>
    %c0_5 = arith.constant 0 : index
    %c0_6 = arith.constant 0 : index
    %6 = vector.load %arg7[%c0_5, %c0_6] : memref<16x16xbf16, #tpu.memory_space<vmem>>, vector<16x16xbf16>
    %cst_7 = arith.constant dense<0.000000e+00> : vector<128x16xf32>
    %7 = tpu.matmul %5, %6, %cst_7 {dimension_numbers = #tpu.dot_dimension_numbers<[1], [0], [0], [1], [0, 0, 1, 1], [], []>} : vector<128x16xbf16>, vector<16x16xbf16>, vector<128x16xf32> -> vector<128x16xf32>
    %8 = arith.subf %4, %7 : vector<128x16xf32>
    %9 = arith.addf %4, %7 : vector<128x16xf32>
    %10 = arith.addf %0, %1 : vector<128x16xf32>
    %11 = arith.truncf %10 : vector<128x16xf32> to vector<128x16xbf16>
    %c0_8 = arith.constant 0 : index
    %c0_9 = arith.constant 0 : index
    %12 = vector.load %arg8[%c0_8, %c0_9] : memref<16x16xbf16, #tpu.memory_space<vmem>>, vector<16x16xbf16>
    %cst_10 = arith.constant dense<0.000000e+00> : vector<128x16xf32>
    %13 = tpu.matmul %11, %12, %cst_10 {dimension_numbers = #tpu.dot_dimension_numbers<[1], [0], [0], [1], [0, 0, 1, 1], [], []>} : vector<128x16xbf16>, vector<16x16xbf16>, vector<128x16xf32> -> vector<128x16xf32>
    %14 = arith.subf %13, %9 : vector<128x16xf32>
    %c0_11 = arith.constant 0 : index
    %c0_12 = arith.constant 0 : index
    %15 = vector.load %arg3[%c0_11, %c0_12] : memref<16x16xbf16, #tpu.memory_space<vmem>>, vector<16x16xbf16>
    %c0_13 = arith.constant 0 : index
    %c0_14 = arith.constant 0 : index
    %16 = vector.load %arg4[%c0_13, %c0_14] : memref<16x16xbf16, #tpu.memory_space<vmem>>, vector<16x16xbf16>
    %c0_15 = arith.constant 0 : index
    %c0_16 = arith.constant 0 : index
    %17 = vector.load %arg5[%c0_15, %c0_16] : memref<16x16xbf16, #tpu.memory_space<vmem>>, vector<16x16xbf16>
    %18 = vector.extract_strided_slice %8 {offsets = [0, 0], sizes = [16, 16], strides = [1, 1]} : vector<128x16xf32> to vector<16x16xf32>
    %19 = vector.extract_strided_slice %14 {offsets = [0, 0], sizes = [16, 16], strides = [1, 1]} : vector<128x16xf32> to vector<16x16xf32>
    %20 = arith.truncf %18 : vector<16x16xf32> to vector<16x16xbf16>
    %cst_17 = arith.constant dense<0.000000e+00> : vector<16x16xf32>
    %21 = tpu.matmul %15, %20, %cst_17 {dimension_numbers = #tpu.dot_dimension_numbers<[1], [0], [0], [1], [0, 0, 1, 1], [], []>} : vector<16x16xbf16>, vector<16x16xbf16>, vector<16x16xf32> -> vector<16x16xf32>
    %22 = arith.truncf %19 : vector<16x16xf32> to vector<16x16xbf16>
    %cst_18 = arith.constant dense<0.000000e+00> : vector<16x16xf32>
    %23 = tpu.matmul %16, %22, %cst_18 {dimension_numbers = #tpu.dot_dimension_numbers<[1], [0], [0], [1], [0, 0, 1, 1], [], []>} : vector<16x16xbf16>, vector<16x16xbf16>, vector<16x16xf32> -> vector<16x16xf32>
    %24 = arith.subf %21, %23 : vector<16x16xf32>
    %c0_19 = arith.constant 0 : index
    %c0_20 = arith.constant 0 : index
    %25 = vector.load %arg9[%c0_19, %c0_20] : memref<128x16xf32, #tpu.memory_space<vmem>>, vector<16x16xf32>
    tpu.vector_store %arg9[%c0_19, %c0_20], %24 {strides = array<i32>} : memref<128x16xf32, #tpu.memory_space<vmem>>, vector<16x16xf32>,
    %26 = arith.addf %21, %23 : vector<16x16xf32>
    %27 = arith.addf %18, %19 : vector<16x16xf32>
    %28 = arith.truncf %27 : vector<16x16xf32> to vector<16x16xbf16>
    %cst_21 = arith.constant dense<0.000000e+00> : vector<16x16xf32>
    %29 = tpu.matmul %17, %28, %cst_21 {dimension_numbers = #tpu.dot_dimension_numbers<[1], [0], [0], [1], [0, 0, 1, 1], [], []>} : vector<16x16xbf16>, vector<16x16xbf16>, vector<16x16xf32> -> vector<16x16xf32>
    %30 = arith.subf %29, %26 : vector<16x16xf32>
    %c0_22 = arith.constant 0 : index
    %c0_23 = arith.constant 0 : index
    %31 = vector.load %arg10[%c0_22, %c0_23] : memref<128x16xf32, #tpu.memory_space<vmem>>, vector<16x16xf32>
    tpu.vector_store %arg10[%c0_22, %c0_23], %30 {strides = array<i32>} : memref<128x16xf32, #tpu.memory_space<vmem>>, vector<16x16xf32>,
    %32 = vector.extract_strided_slice %8 {offsets = [16, 0], sizes = [16, 16], strides = [1, 1]} : vector<128x16xf32> to vector<16x16xf32>
    %33 = vector.extract_strided_slice %14 {offsets = [16, 0], sizes = [16, 16], strides = [1, 1]} : vector<128x16xf32> to vector<16x16xf32>
    %34 = arith.truncf %32 : vector<16x16xf32> to vector<16x16xbf16>
    %cst_24 = arith.constant dense<0.000000e+00> : vector<16x16xf32>
    %35 = tpu.matmul %15, %34, %cst_24 {dimension_numbers = #tpu.dot_dimension_numbers<[1], [0], [0], [1], [0, 0, 1, 1], [], []>} : vector<16x16xbf16>, vector<16x16xbf16>, vector<16x16xf32> -> vector<16x16xf32>
    %36 = arith.truncf %33 : vector<16x16xf32> to vector<16x16xbf16>
    %cst_25 = arith.constant dense<0.000000e+00> : vector<16x16xf32>
    %37 = tpu.matmul %16, %36, %cst_25 {dimension_numbers = #tpu.dot_dimension_numbers<[1], [0], [0], [1], [0, 0, 1, 1], [], []>} : vector<16x16xbf16>, vector<16x16xbf16>, vector<16x16xf32> -> vector<16x16xf32>
    %38 = arith.subf %35, %37 : vector<16x16xf32>
    %c16 = arith.constant 16 : index
    %c0_26 = arith.constant 0 : index
    %39 = vector.load %arg9[%c16, %c0_26] : memref<128x16xf32, #tpu.memory_space<vmem>>, vector<16x16xf32>
    tpu.vector_store %arg9[%c16, %c0_26], %38 {strides = array<i32>} : memref<128x16xf32, #tpu.memory_space<vmem>>, vector<16x16xf32>,
    %40 = arith.addf %35, %37 : vector<16x16xf32>
    %41 = arith.addf %32, %33 : vector<16x16xf32>
    %42 = arith.truncf %41 : vector<16x16xf32> to vector<16x16xbf16>
    %cst_27 = arith.constant dense<0.000000e+00> : vector<16x16xf32>
    %43 = tpu.matmul %17, %42, %cst_27 {dimension_numbers = #tpu.dot_dimension_numbers<[1], [0], [0], [1], [0, 0, 1, 1], [], []>} : vector<16x16xbf16>, vector<16x16xbf16>, vector<16x16xf32> -> vector<16x16xf32>
    %44 = arith.subf %43, %40 : vector<16x16xf32>
    %c16_28 = arith.constant 16 : index
    %c0_29 = arith.constant 0 : index
    %45 = vector.load %arg10[%c16_28, %c0_29] : memref<128x16xf32, #tpu.memory_space<vmem>>, vector<16x16xf32>
    tpu.vector_store %arg10[%c16_28, %c0_29], %44 {strides = array<i32>} : memref<128x16xf32, #tpu.memory_space<vmem>>, vector<16x16xf32>,
    %46 = vector.extract_strided_slice %8 {offsets = [32, 0], sizes = [16, 16], strides = [1, 1]} : vector<128x16xf32> to vector<16x16xf32>
    %47 = vector.extract_strided_slice %14 {offsets = [32, 0], sizes = [16, 16], strides = [1, 1]} : vector<128x16xf32> to vector<16x16xf32>
    %48 = arith.truncf %46 : vector<16x16xf32> to vector<16x16xbf16>
    %cst_30 = arith.constant dense<0.000000e+00> : vector<16x16xf32>
    %49 = tpu.matmul %15, %48, %cst_30 {dimension_numbers = #tpu.dot_dimension_numbers<[1], [0], [0], [1], [0, 0, 1, 1], [], []>} : vector<16x16xbf16>, vector<16x16xbf16>, vector<16x16xf32> -> vector<16x16xf32>
    %50 = arith.truncf %47 : vector<16x16xf32> to vector<16x16xbf16>
    %cst_31 = arith.constant dense<0.000000e+00> : vector<16x16xf32>
    %51 = tpu.matmul %16, %50, %cst_31 {dimension_numbers = #tpu.dot_dimension_numbers<[1], [0], [0], [1], [0, 0, 1, 1], [], []>} : vector<16x16xbf16>, vector<16x16xbf16>, vector<16x16xf32> -> vector<16x16xf32>
    %52 = arith.subf %49, %51 : vector<16x16xf32>
    %c32 = arith.constant 32 : index
    %c0_32 = arith.constant 0 : index
    %53 = vector.load %arg9[%c32, %c0_32] : memref<128x16xf32, #tpu.memory_space<vmem>>, vector<16x16xf32>
    tpu.vector_store %arg9[%c32, %c0_32], %52 {strides = array<i32>} : memref<128x16xf32, #tpu.memory_space<vmem>>, vector<16x16xf32>,
    %54 = arith.addf %49, %51 : vector<16x16xf32>
    %55 = arith.addf %46, %47 : vector<16x16xf32>
    %56 = arith.truncf %55 : vector<16x16xf32> to vector<16x16xbf16>
    %cst_33 = arith.constant dense<0.000000e+00> : vector<16x16xf32>
    %57 = tpu.matmul %17, %56, %cst_33 {dimension_numbers = #tpu.dot_dimension_numbers<[1], [0], [0], [1], [0, 0, 1, 1], [], []>} : vector<16x16xbf16>, vector<16x16xbf16>, vector<16x16xf32> -> vector<16x16xf32>
    %58 = arith.subf %57, %54 : vector<16x16xf32>
    %c32_34 = arith.constant 32 : index
    %c0_35 = arith.constant 0 : index
    %59 = vector.load %arg10[%c32_34, %c0_35] : memref<128x16xf32, #tpu.memory_space<vmem>>, vector<16x16xf32>
    tpu.vector_store %arg10[%c32_34, %c0_35], %58 {strides = array<i32>} : memref<128x16xf32, #tpu.memory_space<vmem>>, vector<16x16xf32>,
    %60 = vector.extract_strided_slice %8 {offsets = [48, 0], sizes = [16, 16], strides = [1, 1]} : vector<128x16xf32> to vector<16x16xf32>
    %61 = vector.extract_strided_slice %14 {offsets = [48, 0], sizes = [16, 16], strides = [1, 1]} : vector<128x16xf32> to vector<16x16xf32>
    %62 = arith.truncf %60 : vector<16x16xf32> to vector<16x16xbf16>
    %cst_36 = arith.constant dense<0.000000e+00> : vector<16x16xf32>
    %63 = tpu.matmul %15, %62, %cst_36 {dimension_numbers = #tpu.dot_dimension_numbers<[1], [0], [0], [1], [0, 0, 1, 1], [], []>} : vector<16x16xbf16>, vector<16x16xbf16>, vector<16x16xf32> -> vector<16x16xf32>
    %64 = arith.truncf %61 : vector<16x16xf32> to vector<16x16xbf16>
    %cst_37 = arith.constant dense<0.000000e+00> : vector<16x16xf32>
    %65 = tpu.matmul %16, %64, %cst_37 {dimension_numbers = #tpu.dot_dimension_numbers<[1], [0], [0], [1], [0, 0, 1, 1], [], []>} : vector<16x16xbf16>, vector<16x16xbf16>, vector<16x16xf32> -> vector<16x16xf32>
    %66 = arith.subf %63, %65 : vector<16x16xf32>
    %c48 = arith.constant 48 : index
    %c0_38 = arith.constant 0 : index
    %67 = vector.load %arg9[%c48, %c0_38] : memref<128x16xf32, #tpu.memory_space<vmem>>, vector<16x16xf32>
    tpu.vector_store %arg9[%c48, %c0_38], %66 {strides = array<i32>} : memref<128x16xf32, #tpu.memory_space<vmem>>, vector<16x16xf32>,
    %68 = arith.addf %63, %65 : vector<16x16xf32>
    %69 = arith.addf %60, %61 : vector<16x16xf32>
    %70 = arith.truncf %69 : vector<16x16xf32> to vector<16x16xbf16>
    %cst_39 = arith.constant dense<0.000000e+00> : vector<16x16xf32>
    %71 = tpu.matmul %17, %70, %cst_39 {dimension_numbers = #tpu.dot_dimension_numbers<[1], [0], [0], [1], [0, 0, 1, 1], [], []>} : vector<16x16xbf16>, vector<16x16xbf16>, vector<16x16xf32> -> vector<16x16xf32>
    %72 = arith.subf %71, %68 : vector<16x16xf32>
    %c48_40 = arith.constant 48 : index
    %c0_41 = arith.constant 0 : index
    %73 = vector.load %arg10[%c48_40, %c0_41] : memref<128x16xf32, #tpu.memory_space<vmem>>, vector<16x16xf32>
    tpu.vector_store %arg10[%c48_40, %c0_41], %72 {strides = array<i32>} : memref<128x16xf32, #tpu.memory_space<vmem>>, vector<16x16xf32>,
    %74 = vector.extract_strided_slice %8 {offsets = [64, 0], sizes = [16, 16], strides = [1, 1]} : vector<128x16xf32> to vector<16x16xf32>
    %75 = vector.extract_strided_slice %14 {offsets = [64, 0], sizes = [16, 16], strides = [1, 1]} : vector<128x16xf32> to vector<16x16xf32>
    %76 = arith.truncf %74 : vector<16x16xf32> to vector<16x16xbf16>
    %cst_42 = arith.constant dense<0.000000e+00> : vector<16x16xf32>
    %77 = tpu.matmul %15, %76, %cst_42 {dimension_numbers = #tpu.dot_dimension_numbers<[1], [0], [0], [1], [0, 0, 1, 1], [], []>} : vector<16x16xbf16>, vector<16x16xbf16>, vector<16x16xf32> -> vector<16x16xf32>
    %78 = arith.truncf %75 : vector<16x16xf32> to vector<16x16xbf16>
    %cst_43 = arith.constant dense<0.000000e+00> : vector<16x16xf32>
    %79 = tpu.matmul %16, %78, %cst_43 {dimension_numbers = #tpu.dot_dimension_numbers<[1], [0], [0], [1], [0, 0, 1, 1], [], []>} : vector<16x16xbf16>, vector<16x16xbf16>, vector<16x16xf32> -> vector<16x16xf32>
    %80 = arith.subf %77, %79 : vector<16x16xf32>
    %c64 = arith.constant 64 : index
    %c0_44 = arith.constant 0 : index
    %81 = vector.load %arg9[%c64, %c0_44] : memref<128x16xf32, #tpu.memory_space<vmem>>, vector<16x16xf32>
    tpu.vector_store %arg9[%c64, %c0_44], %80 {strides = array<i32>} : memref<128x16xf32, #tpu.memory_space<vmem>>, vector<16x16xf32>,
    %82 = arith.addf %77, %79 : vector<16x16xf32>
    %83 = arith.addf %74, %75 : vector<16x16xf32>
    %84 = arith.truncf %83 : vector<16x16xf32> to vector<16x16xbf16>
    %cst_45 = arith.constant dense<0.000000e+00> : vector<16x16xf32>
    %85 = tpu.matmul %17, %84, %cst_45 {dimension_numbers = #tpu.dot_dimension_numbers<[1], [0], [0], [1], [0, 0, 1, 1], [], []>} : vector<16x16xbf16>, vector<16x16xbf16>, vector<16x16xf32> -> vector<16x16xf32>
    %86 = arith.subf %85, %82 : vector<16x16xf32>
    %c64_46 = arith.constant 64 : index
    %c0_47 = arith.constant 0 : index
    %87 = vector.load %arg10[%c64_46, %c0_47] : memref<128x16xf32, #tpu.memory_space<vmem>>, vector<16x16xf32>
    tpu.vector_store %arg10[%c64_46, %c0_47], %86 {strides = array<i32>} : memref<128x16xf32, #tpu.memory_space<vmem>>, vector<16x16xf32>,
    %88 = vector.extract_strided_slice %8 {offsets = [80, 0], sizes = [16, 16], strides = [1, 1]} : vector<128x16xf32> to vector<16x16xf32>
    %89 = vector.extract_strided_slice %14 {offsets = [80, 0], sizes = [16, 16], strides = [1, 1]} : vector<128x16xf32> to vector<16x16xf32>
    %90 = arith.truncf %88 : vector<16x16xf32> to vector<16x16xbf16>
    %cst_48 = arith.constant dense<0.000000e+00> : vector<16x16xf32>
    %91 = tpu.matmul %15, %90, %cst_48 {dimension_numbers = #tpu.dot_dimension_numbers<[1], [0], [0], [1], [0, 0, 1, 1], [], []>} : vector<16x16xbf16>, vector<16x16xbf16>, vector<16x16xf32> -> vector<16x16xf32>
    %92 = arith.truncf %89 : vector<16x16xf32> to vector<16x16xbf16>
    %cst_49 = arith.constant dense<0.000000e+00> : vector<16x16xf32>
    %93 = tpu.matmul %16, %92, %cst_49 {dimension_numbers = #tpu.dot_dimension_numbers<[1], [0], [0], [1], [0, 0, 1, 1], [], []>} : vector<16x16xbf16>, vector<16x16xbf16>, vector<16x16xf32> -> vector<16x16xf32>
    %94 = arith.subf %91, %93 : vector<16x16xf32>
    %c80 = arith.constant 80 : index
    %c0_50 = arith.constant 0 : index
    %95 = vector.load %arg9[%c80, %c0_50] : memref<128x16xf32, #tpu.memory_space<vmem>>, vector<16x16xf32>
    tpu.vector_store %arg9[%c80, %c0_50], %94 {strides = array<i32>} : memref<128x16xf32, #tpu.memory_space<vmem>>, vector<16x16xf32>,
    %96 = arith.addf %91, %93 : vector<16x16xf32>
    %97 = arith.addf %88, %89 : vector<16x16xf32>
    %98 = arith.truncf %97 : vector<16x16xf32> to vector<16x16xbf16>
    %cst_51 = arith.constant dense<0.000000e+00> : vector<16x16xf32>
    %99 = tpu.matmul %17, %98, %cst_51 {dimension_numbers = #tpu.dot_dimension_numbers<[1], [0], [0], [1], [0, 0, 1, 1], [], []>} : vector<16x16xbf16>, vector<16x16xbf16>, vector<16x16xf32> -> vector<16x16xf32>
    %100 = arith.subf %99, %96 : vector<16x16xf32>
    %c80_52 = arith.constant 80 : index
    %c0_53 = arith.constant 0 : index
    %101 = vector.load %arg10[%c80_52, %c0_53] : memref<128x16xf32, #tpu.memory_space<vmem>>, vector<16x16xf32>
    tpu.vector_store %arg10[%c80_52, %c0_53], %100 {strides = array<i32>} : memref<128x16xf32, #tpu.memory_space<vmem>>, vector<16x16xf32>,
    %102 = vector.extract_strided_slice %8 {offsets = [96, 0], sizes = [16, 16], strides = [1, 1]} : vector<128x16xf32> to vector<16x16xf32>
    %103 = vector.extract_strided_slice %14 {offsets = [96, 0], sizes = [16, 16], strides = [1, 1]} : vector<128x16xf32> to vector<16x16xf32>
    %104 = arith.truncf %102 : vector<16x16xf32> to vector<16x16xbf16>
    %cst_54 = arith.constant dense<0.000000e+00> : vector<16x16xf32>
    %105 = tpu.matmul %15, %104, %cst_54 {dimension_numbers = #tpu.dot_dimension_numbers<[1], [0], [0], [1], [0, 0, 1, 1], [], []>} : vector<16x16xbf16>, vector<16x16xbf16>, vector<16x16xf32> -> vector<16x16xf32>
    %106 = arith.truncf %103 : vector<16x16xf32> to vector<16x16xbf16>
    %cst_55 = arith.constant dense<0.000000e+00> : vector<16x16xf32>
    %107 = tpu.matmul %16, %106, %cst_55 {dimension_numbers = #tpu.dot_dimension_numbers<[1], [0], [0], [1], [0, 0, 1, 1], [], []>} : vector<16x16xbf16>, vector<16x16xbf16>, vector<16x16xf32> -> vector<16x16xf32>
    %108 = arith.subf %105, %107 : vector<16x16xf32>
    %c96 = arith.constant 96 : index
    %c0_56 = arith.constant 0 : index
    %109 = vector.load %arg9[%c96, %c0_56] : memref<128x16xf32, #tpu.memory_space<vmem>>, vector<16x16xf32>
    tpu.vector_store %arg9[%c96, %c0_56], %108 {strides = array<i32>} : memref<128x16xf32, #tpu.memory_space<vmem>>, vector<16x16xf32>,
    %110 = arith.addf %105, %107 : vector<16x16xf32>
    %111 = arith.addf %102, %103 : vector<16x16xf32>
    %112 = arith.truncf %111 : vector<16x16xf32> to vector<16x16xbf16>
    %cst_57 = arith.constant dense<0.000000e+00> : vector<16x16xf32>
    %113 = tpu.matmul %17, %112, %cst_57 {dimension_numbers = #tpu.dot_dimension_numbers<[1], [0], [0], [1], [0, 0, 1, 1], [], []>} : vector<16x16xbf16>, vector<16x16xbf16>, vector<16x16xf32> -> vector<16x16xf32>
    %114 = arith.subf %113, %110 : vector<16x16xf32>
    %c96_58 = arith.constant 96 : index
    %c0_59 = arith.constant 0 : index
    %115 = vector.load %arg10[%c96_58, %c0_59] : memref<128x16xf32, #tpu.memory_space<vmem>>, vector<16x16xf32>
    tpu.vector_store %arg10[%c96_58, %c0_59], %114 {strides = array<i32>} : memref<128x16xf32, #tpu.memory_space<vmem>>, vector<16x16xf32>,
    %116 = vector.extract_strided_slice %8 {offsets = [112, 0], sizes = [16, 16], strides = [1, 1]} : vector<128x16xf32> to vector<16x16xf32>
    %117 = vector.extract_strided_slice %14 {offsets = [112, 0], sizes = [16, 16], strides = [1, 1]} : vector<128x16xf32> to vector<16x16xf32>
    %118 = arith.truncf %116 : vector<16x16xf32> to vector<16x16xbf16>
    %cst_60 = arith.constant dense<0.000000e+00> : vector<16x16xf32>
    %119 = tpu.matmul %15, %118, %cst_60 {dimension_numbers = #tpu.dot_dimension_numbers<[1], [0], [0], [1], [0, 0, 1, 1], [], []>} : vector<16x16xbf16>, vector<16x16xbf16>, vector<16x16xf32> -> vector<16x16xf32>
    %120 = arith.truncf %117 : vector<16x16xf32> to vector<16x16xbf16>
    %cst_61 = arith.constant dense<0.000000e+00> : vector<16x16xf32>
    %121 = tpu.matmul %16, %120, %cst_61 {dimension_numbers = #tpu.dot_dimension_numbers<[1], [0], [0], [1], [0, 0, 1, 1], [], []>} : vector<16x16xbf16>, vector<16x16xbf16>, vector<16x16xf32> -> vector<16x16xf32>
    %122 = arith.subf %119, %121 : vector<16x16xf32>
    %c112 = arith.constant 112 : index
    %c0_62 = arith.constant 0 : index
    %123 = vector.load %arg9[%c112, %c0_62] : memref<128x16xf32, #tpu.memory_space<vmem>>, vector<16x16xf32>
    tpu.vector_store %arg9[%c112, %c0_62], %122 {strides = array<i32>} : memref<128x16xf32, #tpu.memory_space<vmem>>, vector<16x16xf32>,
    %124 = arith.addf %119, %121 : vector<16x16xf32>
    %125 = arith.addf %116, %117 : vector<16x16xf32>
    %126 = arith.truncf %125 : vector<16x16xf32> to vector<16x16xbf16>
    %cst_63 = arith.constant dense<0.000000e+00> : vector<16x16xf32>
    %127 = tpu.matmul %17, %126, %cst_63 {dimension_numbers = #tpu.dot_dimension_numbers<[1], [0], [0], [1], [0, 0, 1, 1], [], []>} : vector<16x16xbf16>, vector<16x16xbf16>, vector<16x16xf32> -> vector<16x16xf32>
    %128 = arith.subf %127, %124 : vector<16x16xf32>
    %c112_64 = arith.constant 112 : index
    %c0_65 = arith.constant 0 : index
    %129 = vector.load %arg10[%c112_64, %c0_65] : memref<128x16xf32, #tpu.memory_space<vmem>>, vector<16x16xf32>
    tpu.vector_store %arg10[%c112_64, %c0_65], %128 {strides = array<i32>} : memref<128x16xf32, #tpu.memory_space<vmem>>, vector<16x16xf32>,
    return
  }
  func.func @transform_0(%arg0: i32) -> (i32, i32) {
    %c0_i32 = arith.constant 0 : i32
    %c0_i32_0 = arith.constant 0 : i32
    return %arg0, %c0_i32 : i32, i32
  }
  func.func @transform_1(%arg0: i32) -> (i32, i32) {
    %c0_i32 = arith.constant 0 : i32
    %c0_i32_0 = arith.constant 0 : i32
    return %arg0, %c0_i32 : i32, i32
  }
  func.func @transform_2(%arg0: i32) -> (i32, i32) {
    %c0_i32 = arith.constant 0 : i32
    %c0_i32_0 = arith.constant 0 : i32
    %c0_i32_1 = arith.constant 0 : i32
    return %c0_i32, %c0_i32_0 : i32, i32
  }
  func.func @transform_3(%arg0: i32) -> (i32, i32) {
    %c0_i32 = arith.constant 0 : i32
    %c0_i32_0 = arith.constant 0 : i32
    %c0_i32_1 = arith.constant 0 : i32
    return %c0_i32, %c0_i32_0 : i32, i32
  }
  func.func @transform_4(%arg0: i32) -> (i32, i32) {
    %c0_i32 = arith.constant 0 : i32
    %c0_i32_0 = arith.constant 0 : i32
    %c0_i32_1 = arith.constant 0 : i32
    return %c0_i32, %c0_i32_0 : i32, i32
  }
  func.func @transform_5(%arg0: i32) -> (i32, i32) {
    %c0_i32 = arith.constant 0 : i32
    %c0_i32_0 = arith.constant 0 : i32
    %c0_i32_1 = arith.constant 0 : i32
    return %c0_i32, %c0_i32_0 : i32, i32
  }
  func.func @transform_6(%arg0: i32) -> (i32, i32) {
    %c0_i32 = arith.constant 0 : i32
    %c0_i32_0 = arith.constant 0 : i32
    %c0_i32_1 = arith.constant 0 : i32
    return %c0_i32, %c0_i32_0 : i32, i32
  }
  func.func @transform_7(%arg0: i32) -> (i32, i32) {
    %c0_i32 = arith.constant 0 : i32
    %c0_i32_0 = arith.constant 0 : i32
    %c0_i32_1 = arith.constant 0 : i32
    return %c0_i32, %c0_i32_0 : i32, i32
  }
  func.func @transform_8(%arg0: i32) -> (i32, i32) {
    %c0_i32 = arith.constant 0 : i32
    %c0_i32_0 = arith.constant 0 : i32
    return %arg0, %c0_i32 : i32, i32
  }
  func.func @transform_9(%arg0: i32) -> (i32, i32) {
    %c0_i32 = arith.constant 0 : i32
    %c0_i32_0 = arith.constant 0 : i32
    return %arg0, %c0_i32 : i32, i32
  }
}

</mosaic_0001>

<llo_original>
// kernel: tpu_custom_call.1
$region0: #{tpu_custom_call.1}
  #allocation0 [shape = 'u32[]', space=smem, size = 0x4, offset = 0x4, fixed_abs, tag = 'smem constant byte address 0x4 - core index']
  #allocation1 [shape = 'u32[72,128]{1,0:T(1,128)}', space=vmem, size = 0x9000, scoped, tag = 'internal scratch']
  %s0 = inlined_call_operand.vmem [shape: f32[128,16], index: 0, kind: input, shape index: {}]
  %s1 = inlined_call_operand.vmem [shape: f32[128,16], index: 1, kind: input, shape index: {}]
  %s2 = inlined_call_operand.vmem [shape: bf16[16,16], index: 2, kind: input, shape index: {}]
  %s3 = inlined_call_operand.vmem [shape: bf16[16,16], index: 3, kind: input, shape index: {}]
  %s4 = inlined_call_operand.vmem [shape: bf16[16,16], index: 4, kind: input, shape index: {}]
  %s5 = inlined_call_operand.vmem [shape: bf16[16,16], index: 5, kind: input, shape index: {}]
  %s6 = inlined_call_operand.vmem [shape: bf16[16,16], index: 6, kind: input, shape index: {}]
  %s7 = inlined_call_operand.vmem [shape: bf16[16,16], index: 7, kind: input, shape index: {}]
  %s8 = inlined_call_operand.vmem [shape: f32[128,16], index: 8, kind: output, shape index: {0}]
  %s9 = inlined_call_operand.vmem [shape: f32[128,16], index: 9, kind: output, shape index: {1}]
  %10 = xla_tuple %s8, %s9
  %s11 = sld [smem:[#allocation0]]
  $region50: #{tpu_custom_call.1} parent=0
    _
  %s13 = ssub.s32 1, %s11
  %s14 = scalar_select 0, %s13, %s11
  // Predicated region
  $region2: #{tpu_custom_call.1} parent=0 // pred_check
    _
  $region3: #{tpu_custom_call.1} parent=0 // pred_check_branch
    %16 = sbr.rel (0) target = $region5
  $region4: #{tpu_custom_call.1} parent=0 // pred_region
    _
  $region5: #{tpu_custom_call.1} parent=0 // pred_fallthru
    _
  // Predicated region
  $region6: #{tpu_custom_call.1} parent=0 // pred_check
    _
  $region7: #{tpu_custom_call.1} parent=0 // pred_check_branch
    %18 = sbr.rel (0) target = $region9
  $region8: #{tpu_custom_call.1} parent=0 // pred_region
    _
  $region9: #{tpu_custom_call.1} parent=0 // pred_fallthru
    _
  // Predicated region
  $region10: #{tpu_custom_call.1} parent=0 // pred_check
    _
  $region11: #{tpu_custom_call.1} parent=0 // pred_check_branch
    %20 = sbr.rel (0) target = $region13
  $region12: #{tpu_custom_call.1} parent=0 // pred_region
    _
  $region13: #{tpu_custom_call.1} parent=0 // pred_fallthru
    _
  // Predicated region
  $region14: #{tpu_custom_call.1} parent=0 // pred_check
    _
  $region15: #{tpu_custom_call.1} parent=0 // pred_check_branch
    %22 = sbr.rel (0) target = $region17
  $region16: #{tpu_custom_call.1} parent=0 // pred_region
    _
  $region17: #{tpu_custom_call.1} parent=0 // pred_fallthru
    _
  // Predicated region
  $region18: #{tpu_custom_call.1} parent=0 // pred_check
    _
  $region19: #{tpu_custom_call.1} parent=0 // pred_check_branch
    %24 = sbr.rel (0) target = $region21
  $region20: #{tpu_custom_call.1} parent=0 // pred_region
    _
  $region21: #{tpu_custom_call.1} parent=0 // pred_fallthru
    _
  // Predicated region
  $region22: #{tpu_custom_call.1} parent=0 // pred_check
    _
  $region23: #{tpu_custom_call.1} parent=0 // pred_check_branch
    %26 = sbr.rel (0) target = $region25
  $region24: #{tpu_custom_call.1} parent=0 // pred_region
    _
  $region25: #{tpu_custom_call.1} parent=0 // pred_fallthru
    _
  // Predicated region
  $region26: #{tpu_custom_call.1} parent=0 // pred_check
    _
  $region27: #{tpu_custom_call.1} parent=0 // pred_check_branch
    %28 = sbr.rel (0) target = $region29
  $region28: #{tpu_custom_call.1} parent=0 // pred_region
    _
  $region29: #{tpu_custom_call.1} parent=0 // pred_fallthru
    _
  // Predicated region
  $region30: #{tpu_custom_call.1} parent=0 // pred_check
    _
  $region31: #{tpu_custom_call.1} parent=0 // pred_check_branch
    %30 = sbr.rel (0) target = $region33
  $region32: #{tpu_custom_call.1} parent=0 // pred_region
    _
  $region33: #{tpu_custom_call.1} parent=0 // pred_fallthru
    _
  %v32 = vld [vmem:[%s0] sm:$0xff]
  %v33 = vld [vmem:[%s0 + $0x8] sm:$0xff]
  %v34 = vld [vmem:[%s0 + $0x10] sm:$0xff]
  %v35 = vld [vmem:[%s0 + $0x18] sm:$0xff]
  %v36 = vld [vmem:[%s0 + $0x20] sm:$0xff]
  %v37 = vld [vmem:[%s0 + $0x28] sm:$0xff]
  %v38 = vld [vmem:[%s0 + $0x30] sm:$0xff]
  %v39 = vld [vmem:[%s0 + $0x38] sm:$0xff]
  %v40 = vld [vmem:[%s0 + $0x40] sm:$0xff]
  %v41 = vld [vmem:[%s0 + $0x48] sm:$0xff]
  %v42 = vld [vmem:[%s0 + $0x50] sm:$0xff]
  %v43 = vld [vmem:[%s0 + $0x58] sm:$0xff]
  %v44 = vld [vmem:[%s0 + $0x60] sm:$0xff]
  %v45 = vld [vmem:[%s0 + $0x68] sm:$0xff]
  %v46 = vld [vmem:[%s0 + $0x70] sm:$0xff]
  %v47 = vld [vmem:[%s0 + $0x78] sm:$0xff]
  %v48 = vld [vmem:[%s1] sm:$0xff]
  %v49 = vld [vmem:[%s1 + $0x8] sm:$0xff]
  %v50 = vld [vmem:[%s1 + $0x10] sm:$0xff]
  %v51 = vld [vmem:[%s1 + $0x18] sm:$0xff]
  %v52 = vld [vmem:[%s1 + $0x20] sm:$0xff]
  %v53 = vld [vmem:[%s1 + $0x28] sm:$0xff]
  %v54 = vld [vmem:[%s1 + $0x30] sm:$0xff]
  %v55 = vld [vmem:[%s1 + $0x38] sm:$0xff]
  %v56 = vld [vmem:[%s1 + $0x40] sm:$0xff]
  %v57 = vld [vmem:[%s1 + $0x48] sm:$0xff]
  %v58 = vld [vmem:[%s1 + $0x50] sm:$0xff]
  %v59 = vld [vmem:[%s1 + $0x58] sm:$0xff]
  %v60 = vld [vmem:[%s1 + $0x60] sm:$0xff]
  %v61 = vld [vmem:[%s1 + $0x68] sm:$0xff]
  %v62 = vld [vmem:[%s1 + $0x70] sm:$0xff]
  %v63 = vld [vmem:[%s1 + $0x78] sm:$0xff]
  %v64 = vpack.c.bf16 %v33, %v32
  %v65 = vpack.c.bf16 %v35, %v34
  %v66 = vpack.c.bf16 %v37, %v36
  %v67 = vpack.c.bf16 %v39, %v38
  %v68 = vpack.c.bf16 %v41, %v40
  %v69 = vpack.c.bf16 %v43, %v42
  %v70 = vpack.c.bf16 %v45, %v44
  %v71 = vpack.c.bf16 %v47, %v46
  %v72 = vld [vmem:[%s5] sm:$0xf]
  %v73 = vld [vmem:[%s5 + $0x4] sm:$0xf]
  %v76 = vunpack.c.l.b16 %v72
  %v77 = vunpack.c.l.b16 %v73
  %v78 = vpack.c.b16 %v77, %v76
  %vm80 = vcmask 130048
  %v82 = vsel %vm80, %v64, 0
  %v85 = vsel %vm80, %v65, 0
  %v88 = vsel %vm80, %v66, 0
  %v91 = vsel %vm80, %v67, 0
  %v94 = vsel %vm80, %v68, 0
  %v97 = vsel %vm80, %v69, 0
  %v100 = vsel %vm80, %v70, 0
  %v103 = vsel %vm80, %v71, 0
  %105 = vmatpush.bf16.msra.mxu0 0
  %106 = vmatpush.bf16.msra.mxu0 0
  %107 = vmatpush.bf16.msra.mxu0 0
  %108 = vmatpush.bf16.msra.mxu0 0
  %109 = vmatpush.bf16.msra.mxu0 0
  %110 = vmatpush.bf16.msra.mxu0 0
  %111 = vmatpush.bf16.msra.mxu0 0
  %112 = vmatpush.bf16.msra.mxu0 %v78
  %113 = vmatmul.bf16.gmra.mxu0 %v82
  %v114 = vpop.f32.mrf.mxu0
  %v115 = vadd.f32 0.0, %v114
  %v116 = vpop.f32.mrf.mxu0
  %v117 = vadd.f32 0.0, %v116
  %118 = vmatmul.bf16.gmra.mxu0 %v85
  %v119 = vpop.f32.mrf.mxu0
  %v120 = vadd.f32 0.0, %v119
  %v121 = vpop.f32.mrf.mxu0
  %v122 = vadd.f32 0.0, %v121
  %123 = vmatmul.bf16.gmra.mxu0 %v88
  %v124 = vpop.f32.mrf.mxu0
  %v125 = vadd.f32 0.0, %v124
  %v126 = vpop.f32.mrf.mxu0
  %v127 = vadd.f32 0.0, %v126
  %128 = vmatmul.bf16.gmra.mxu0 %v91
  %v129 = vpop.f32.mrf.mxu0
  %v130 = vadd.f32 0.0, %v129
  %v131 = vpop.f32.mrf.mxu0
  %v132 = vadd.f32 0.0, %v131
  %133 = vmatmul.bf16.gmra.mxu0 %v94
  %v134 = vpop.f32.mrf.mxu0
  %v135 = vadd.f32 0.0, %v134
  %v136 = vpop.f32.mrf.mxu0
  %v137 = vadd.f32 0.0, %v136
  %138 = vmatmul.bf16.gmra.mxu0 %v97
  %v139 = vpop.f32.mrf.mxu0
  %v140 = vadd.f32 0.0, %v139
  %v141 = vpop.f32.mrf.mxu0
  %v142 = vadd.f32 0.0, %v141
  %143 = vmatmul.bf16.gmra.mxu0 %v100
  %v144 = vpop.f32.mrf.mxu0
  %v145 = vadd.f32 0.0, %v144
  %v146 = vpop.f32.mrf.mxu0
  %v147 = vadd.f32 0.0, %v146
  %148 = vmatmul.bf16.gmra.mxu0 %v103
  %v149 = vpop.f32.mrf.mxu0
  %v150 = vadd.f32 0.0, %v149
  %v151 = vpop.f32.mrf.mxu0
  %v152 = vadd.f32 0.0, %v151
  %153 = vdwg.mxu0
  %v154 = vpack.c.bf16 %v49, %v48
  %v155 = vpack.c.bf16 %v51, %v50
  %v156 = vpack.c.bf16 %v53, %v52
  %v157 = vpack.c.bf16 %v55, %v54
  %v158 = vpack.c.bf16 %v57, %v56
  %v159 = vpack.c.bf16 %v59, %v58
  %v160 = vpack.c.bf16 %v61, %v60
  %v161 = vpack.c.bf16 %v63, %v62
  %v162 = vld [vmem:[%s6] sm:$0xf]
  %v163 = vld [vmem:[%s6 + $0x4] sm:$0xf]
  %v166 = vunpack.c.l.b16 %v162
  %v167 = vunpack.c.l.b16 %v163
  %v168 = vpack.c.b16 %v167, %v166
  %v171 = vsel %vm80, %v154, 0
  %v174 = vsel %vm80, %v155, 0
  %v177 = vsel %vm80, %v156, 0
  %v180 = vsel %vm80, %v157, 0
  %v183 = vsel %vm80, %v158, 0
  %v186 = vsel %vm80, %v159, 0
  %v189 = vsel %vm80, %v160, 0
  %v192 = vsel %vm80, %v161, 0
  %194 = vmatpush.bf16.msra.mxu0 0
  %195 = vmatpush.bf16.msra.mxu0 0
  %196 = vmatpush.bf16.msra.mxu0 0
  %197 = vmatpush.bf16.msra.mxu0 0
  %198 = vmatpush.bf16.msra.mxu0 0
  %199 = vmatpush.bf16.msra.mxu0 0
  %200 = vmatpush.bf16.msra.mxu0 0
  %201 = vmatpush.bf16.msra.mxu0 %v168
  %202 = vmatmul.bf16.gmra.mxu0 %v171
  %v203 = vpop.f32.mrf.mxu0
  %v204 = vadd.f32 0.0, %v203
  %v205 = vpop.f32.mrf.mxu0
  %v206 = vadd.f32 0.0, %v205
  %207 = vmatmul.bf16.gmra.mxu0 %v174
  %v208 = vpop.f32.mrf.mxu0
  %v209 = vadd.f32 0.0, %v208
  %v210 = vpop.f32.mrf.mxu0
  %v211 = vadd.f32 0.0, %v210
  %212 = vmatmul.bf16.gmra.mxu0 %v177
  %v213 = vpop.f32.mrf.mxu0
  %v214 = vadd.f32 0.0, %v213
  %v215 = vpop.f32.mrf.mxu0
  %v216 = vadd.f32 0.0, %v215
  %217 = vmatmul.bf16.gmra.mxu0 %v180
  %v218 = vpop.f32.mrf.mxu0
  %v219 = vadd.f32 0.0, %v218
  %v220 = vpop.f32.mrf.mxu0
  %v221 = vadd.f32 0.0, %v220
  %222 = vmatmul.bf16.gmra.mxu0 %v183
  %v223 = vpop.f32.mrf.mxu0
  %v224 = vadd.f32 0.0, %v223
  %v225 = vpop.f32.mrf.mxu0
  %v226 = vadd.f32 0.0, %v225
  %227 = vmatmul.bf16.gmra.mxu0 %v186
  %v228 = vpop.f32.mrf.mxu0
  %v229 = vadd.f32 0.0, %v228
  %v230 = vpop.f32.mrf.mxu0
  %v231 = vadd.f32 0.0, %v230
  %232 = vmatmul.bf16.gmra.mxu0 %v189
  %v233 = vpop.f32.mrf.mxu0
  %v234 = vadd.f32 0.0, %v233
  %v235 = vpop.f32.mrf.mxu0
  %v236 = vadd.f32 0.0, %v235
  %237 = vmatmul.bf16.gmra.mxu0 %v192
  %v238 = vpop.f32.mrf.mxu0
  %v239 = vadd.f32 0.0, %v238
  %v240 = vpop.f32.mrf.mxu0
  %v241 = vadd.f32 0.0, %v240
  %242 = vdwg.mxu0
  %v243 = vsub.f32 %v115, %v204
  %v244 = vsub.f32 %v117, %v206
  %v245 = vsub.f32 %v120, %v209
  %v246 = vsub.f32 %v122, %v211
  %v247 = vsub.f32 %v125, %v214
  %v248 = vsub.f32 %v127, %v216
  %v249 = vsub.f32 %v130, %v219
  %v250 = vsub.f32 %v132, %v221
  %v251 = vsub.f32 %v135, %v224
  %v252 = vsub.f32 %v137, %v226
  %v253 = vsub.f32 %v140, %v229
  %v254 = vsub.f32 %v142, %v231
  %v255 = vsub.f32 %v145, %v234
  %v256 = vsub.f32 %v147, %v236
  %v257 = vsub.f32 %v150, %v239
  %v258 = vsub.f32 %v152, %v241
  %v259 = vadd.f32 %v115, %v204
  %v260 = vadd.f32 %v117, %v206
  %v261 = vadd.f32 %v120, %v209
  %v262 = vadd.f32 %v122, %v211
  %v263 = vadd.f32 %v125, %v214
  %v264 = vadd.f32 %v127, %v216
  %v265 = vadd.f32 %v130, %v219
  %v266 = vadd.f32 %v132, %v221
  %v267 = vadd.f32 %v135, %v224
  %v268 = vadd.f32 %v137, %v226
  %v269 = vadd.f32 %v140, %v229
  %v270 = vadd.f32 %v142, %v231
  %v271 = vadd.f32 %v145, %v234
  %v272 = vadd.f32 %v147, %v236
  %v273 = vadd.f32 %v150, %v239
  %v274 = vadd.f32 %v152, %v241
  %v275 = vadd.f32 %v32, %v48
  %v276 = vadd.f32 %v33, %v49
  %v277 = vadd.f32 %v34, %v50
  %v278 = vadd.f32 %v35, %v51
  %v279 = vadd.f32 %v36, %v52
  %v280 = vadd.f32 %v37, %v53
  %v281 = vadd.f32 %v38, %v54
  %v282 = vadd.f32 %v39, %v55
  %v283 = vadd.f32 %v40, %v56
  %v284 = vadd.f32 %v41, %v57
  %v285 = vadd.f32 %v42, %v58
  %v286 = vadd.f32 %v43, %v59
  %v287 = vadd.f32 %v44, %v60
  %v288 = vadd.f32 %v45, %v61
  %v289 = vadd.f32 %v46, %v62
  %v290 = vadd.f32 %v47, %v63
  %v291 = vpack.c.bf16 %v276, %v275
  %v292 = vpack.c.bf16 %v278, %v277
  %v293 = vpack.c.bf16 %v280, %v279
  %v294 = vpack.c.bf16 %v282, %v281
  %v295 = vpack.c.bf16 %v284, %v283
  %v296 = vpack.c.bf16 %v286, %v285
  %v297 = vpack.c.bf16 %v288, %v287
  %v298 = vpack.c.bf16 %v290, %v289
  %v299 = vld [vmem:[%s7] sm:$0xf]
  %v300 = vld [vmem:[%s7 + $0x4] sm:$0xf]
  %v303 = vunpack.c.l.b16 %v299
  %v304 = vunpack.c.l.b16 %v300
  %v305 = vpack.c.b16 %v304, %v303
  %v308 = vsel %vm80, %v291, 0
  %v311 = vsel %vm80, %v292, 0
  %v314 = vsel %vm80, %v293, 0
  %v317 = vsel %vm80, %v294, 0
  %v320 = vsel %vm80, %v295, 0
  %v323 = vsel %vm80, %v296, 0
  %v326 = vsel %vm80, %v297, 0
  %v329 = vsel %vm80, %v298, 0
  %331 = vmatpush.bf16.msra.mxu0 0
  %332 = vmatpush.bf16.msra.mxu0 0
  %333 = vmatpush.bf16.msra.mxu0 0
  %334 = vmatpush.bf16.msra.mxu0 0
  %335 = vmatpush.bf16.msra.mxu0 0
  %336 = vmatpush.bf16.msra.mxu0 0
  %337 = vmatpush.bf16.msra.mxu0 0
  %338 = vmatpush.bf16.msra.mxu0 %v305
  %339 = vmatmul.bf16.gmra.mxu0 %v308
  %v340 = vpop.f32.mrf.mxu0
  %v341 = vadd.f32 0.0, %v340
  %v342 = vpop.f32.mrf.mxu0
  %v343 = vadd.f32 0.0, %v342
  %344 = vmatmul.bf16.gmra.mxu0 %v311
  %v345 = vpop.f32.mrf.mxu0
  %v346 = vadd.f32 0.0, %v345
  %v347 = vpop.f32.mrf.mxu0
  %v348 = vadd.f32 0.0, %v347
  %349 = vmatmul.bf16.gmra.mxu0 %v314
  %v350 = vpop.f32.mrf.mxu0
  %v351 = vadd.f32 0.0, %v350
  %v352 = vpop.f32.mrf.mxu0
  %v353 = vadd.f32 0.0, %v352
  %354 = vmatmul.bf16.gmra.mxu0 %v317
  %v355 = vpop.f32.mrf.mxu0
  %v356 = vadd.f32 0.0, %v355
  %v357 = vpop.f32.mrf.mxu0
  %v358 = vadd.f32 0.0, %v357
  %359 = vmatmul.bf16.gmra.mxu0 %v320
  %v360 = vpop.f32.mrf.mxu0
  %v361 = vadd.f32 0.0, %v360
  %v362 = vpop.f32.mrf.mxu0
  %v363 = vadd.f32 0.0, %v362
  %364 = vmatmul.bf16.gmra.mxu0 %v323
  %v365 = vpop.f32.mrf.mxu0
  %v366 = vadd.f32 0.0, %v365
  %v367 = vpop.f32.mrf.mxu0
  %v368 = vadd.f32 0.0, %v367
  %369 = vmatmul.bf16.gmra.mxu0 %v326
  %v370 = vpop.f32.mrf.mxu0
  %v371 = vadd.f32 0.0, %v370
  %v372 = vpop.f32.mrf.mxu0
  %v373 = vadd.f32 0.0, %v372
  %374 = vmatmul.bf16.gmra.mxu0 %v329
  %v375 = vpop.f32.mrf.mxu0
  %v376 = vadd.f32 0.0, %v375
  %v377 = vpop.f32.mrf.mxu0
  %v378 = vadd.f32 0.0, %v377
  %379 = vdwg.mxu0
  %v380 = vsub.f32 %v341, %v259
  %v381 = vsub.f32 %v343, %v260
  %v382 = vsub.f32 %v346, %v261
  %v383 = vsub.f32 %v348, %v262
  %v384 = vsub.f32 %v351, %v263
  %v385 = vsub.f32 %v353, %v264
  %v386 = vsub.f32 %v356, %v265
  %v387 = vsub.f32 %v358, %v266
  %v388 = vsub.f32 %v361, %v267
  %v389 = vsub.f32 %v363, %v268
  %v390 = vsub.f32 %v366, %v269
  %v391 = vsub.f32 %v368, %v270
  %v392 = vsub.f32 %v371, %v271
  %v393 = vsub.f32 %v373, %v272
  %v394 = vsub.f32 %v376, %v273
  %v395 = vsub.f32 %v378, %v274
  %v396 = vld [vmem:[%s2] sm:$0xf]
  %v397 = vld [vmem:[%s2 + $0x4] sm:$0xf]
  %v398 = vld [vmem:[%s3] sm:$0xf]
  %v399 = vld [vmem:[%s3 + $0x4] sm:$0xf]
  %v400 = vld [vmem:[%s4] sm:$0xf]
  %v401 = vld [vmem:[%s4 + $0x4] sm:$0xf]
  %v402 = vpack.c.bf16 %v244, %v243
  %v405 = vunpack.c.l.b16 %v396
  %v406 = vunpack.c.l.b16 %v397
  %v407 = vpack.c.b16 %v406, %v405
  %v409 = vsel %vm80, %v407, 0
  %411 = vmatpush.bf16.msra.mxu0 0
  %412 = vmatpush.bf16.msra.mxu0 0
  %413 = vmatpush.bf16.msra.mxu0 0
  %414 = vmatpush.bf16.msra.mxu0 0
  %415 = vmatpush.bf16.msra.mxu0 0
  %416 = vmatpush.bf16.msra.mxu0 0
  %417 = vmatpush.bf16.msra.mxu0 0
  %418 = vmatpush.bf16.msra.mxu0 %v402
  %419 = vmatmul.bf16.gmra.mxu0 %v409
  %v420 = vpop.f32.mrf.mxu0
  %v421 = vadd.f32 0.0, %v420
  %v422 = vpop.f32.mrf.mxu0
  %v423 = vadd.f32 0.0, %v422
  %424 = vdwg.mxu0
  %v425 = vpack.c.bf16 %v381, %v380
  %v428 = vunpack.c.l.b16 %v398
  %v429 = vunpack.c.l.b16 %v399
  %v430 = vpack.c.b16 %v429, %v428
  %v432 = vsel %vm80, %v430, 0
  %434 = vmatpush.bf16.msra.mxu0 0
  %435 = vmatpush.bf16.msra.mxu0 0
  %436 = vmatpush.bf16.msra.mxu0 0
  %437 = vmatpush.bf16.msra.mxu0 0
  %438 = vmatpush.bf16.msra.mxu0 0
  %439 = vmatpush.bf16.msra.mxu0 0
  %440 = vmatpush.bf16.msra.mxu0 0
  %441 = vmatpush.bf16.msra.mxu0 %v425
  %442 = vmatmul.bf16.gmra.mxu0 %v432
  %v443 = vpop.f32.mrf.mxu0
  %v444 = vadd.f32 0.0, %v443
  %v445 = vpop.f32.mrf.mxu0
  %v446 = vadd.f32 0.0, %v445
  %447 = vdwg.mxu0
  %v448 = vsub.f32 %v421, %v444
  %v449 = vsub.f32 %v423, %v446
  %450 = vst.msk [vmem:[%s8] sm:$0xff] %vm80, %v448
  %451 = vst.msk [vmem:[%s8 + $0x8] sm:$0xff] %vm80, %v449
  %v452 = vadd.f32 %v421, %v444
  %v453 = vadd.f32 %v423, %v446
  %v454 = vadd.f32 %v243, %v380
  %v455 = vadd.f32 %v244, %v381
  %v456 = vpack.c.bf16 %v455, %v454
  %v459 = vunpack.c.l.b16 %v400
  %v460 = vunpack.c.l.b16 %v401
  %v461 = vpack.c.b16 %v460, %v459
  %v463 = vsel %vm80, %v461, 0
  %465 = vmatpush.bf16.msra.mxu0 0
  %466 = vmatpush.bf16.msra.mxu0 0
  %467 = vmatpush.bf16.msra.mxu0 0
  %468 = vmatpush.bf16.msra.mxu0 0
  %469 = vmatpush.bf16.msra.mxu0 0
  %470 = vmatpush.bf16.msra.mxu0 0
  %471 = vmatpush.bf16.msra.mxu0 0
  %472 = vmatpush.bf16.msra.mxu0 %v456
  %473 = vmatmul.bf16.gmra.mxu0 %v463
  %v474 = vpop.f32.mrf.mxu0
  %v475 = vadd.f32 0.0, %v474
  %v476 = vpop.f32.mrf.mxu0
  %v477 = vadd.f32 0.0, %v476
  %478 = vdwg.mxu0
  %v479 = vsub.f32 %v475, %v452
  %v480 = vsub.f32 %v477, %v453
  %481 = vst.msk [vmem:[%s9] sm:$0xff] %vm80, %v479
  %482 = vst.msk [vmem:[%s9 + $0x8] sm:$0xff] %vm80, %v480
  %v483 = vpack.c.bf16 %v246, %v245
  %484 = vmatpush.bf16.msra.mxu0 0
  %485 = vmatpush.bf16.msra.mxu0 0
  %486 = vmatpush.bf16.msra.mxu0 0
  %487 = vmatpush.bf16.msra.mxu0 0
  %488 = vmatpush.bf16.msra.mxu0 0
  %489 = vmatpush.bf16.msra.mxu0 0
  %490 = vmatpush.bf16.msra.mxu0 0
  %491 = vmatpush.bf16.msra.mxu0 %v483
  %492 = vmatmul.bf16.gmra.mxu0 %v409
  %v493 = vpop.f32.mrf.mxu0
  %v494 = vadd.f32 0.0, %v493
  %v495 = vpop.f32.mrf.mxu0
  %v496 = vadd.f32 0.0, %v495
  %497 = vdwg.mxu0
  %v498 = vpack.c.bf16 %v383, %v382
  %499 = vmatpush.bf16.msra.mxu0 0
  %500 = vmatpush.bf16.msra.mxu0 0
  %501 = vmatpush.bf16.msra.mxu0 0
  %502 = vmatpush.bf16.msra.mxu0 0
  %503 = vmatpush.bf16.msra.mxu0 0
  %504 = vmatpush.bf16.msra.mxu0 0
  %505 = vmatpush.bf16.msra.mxu0 0
  %506 = vmatpush.bf16.msra.mxu0 %v498
  %507 = vmatmul.bf16.gmra.mxu0 %v432
  %v508 = vpop.f32.mrf.mxu0
  %v509 = vadd.f32 0.0, %v508
  %v510 = vpop.f32.mrf.mxu0
  %v511 = vadd.f32 0.0, %v510
  %512 = vdwg.mxu0
  %v513 = vsub.f32 %v494, %v509
  %v514 = vsub.f32 %v496, %v511
  %515 = vst.msk [vmem:[%s8 + $0x10] sm:$0xff] %vm80, %v513
  %516 = vst.msk [vmem:[%s8 + $0x18] sm:$0xff] %vm80, %v514
  %v517 = vadd.f32 %v494, %v509
  %v518 = vadd.f32 %v496, %v511
  %v519 = vadd.f32 %v245, %v382
  %v520 = vadd.f32 %v246, %v383
  %v521 = vpack.c.bf16 %v520, %v519
  %522 = vmatpush.bf16.msra.mxu0 0
  %523 = vmatpush.bf16.msra.mxu0 0
  %524 = vmatpush.bf16.msra.mxu0 0
  %525 = vmatpush.bf16.msra.mxu0 0
  %526 = vmatpush.bf16.msra.mxu0 0
  %527 = vmatpush.bf16.msra.mxu0 0
  %528 = vmatpush.bf16.msra.mxu0 0
  %529 = vmatpush.bf16.msra.mxu0 %v521
  %530 = vmatmul.bf16.gmra.mxu0 %v463
  %v531 = vpop.f32.mrf.mxu0
  %v532 = vadd.f32 0.0, %v531
  %v533 = vpop.f32.mrf.mxu0
  %v534 = vadd.f32 0.0, %v533
  %535 = vdwg.mxu0
  %v536 = vsub.f32 %v532, %v517
  %v537 = vsub.f32 %v534, %v518
  %538 = vst.msk [vmem:[%s9 + $0x10] sm:$0xff] %vm80, %v536
  %539 = vst.msk [vmem:[%s9 + $0x18] sm:$0xff] %vm80, %v537
  %v540 = vpack.c.bf16 %v248, %v247
  %541 = vmatpush.bf16.msra.mxu0 0
  %542 = vmatpush.bf16.msra.mxu0 0
  %543 = vmatpush.bf16.msra.mxu0 0
  %544 = vmatpush.bf16.msra.mxu0 0
  %545 = vmatpush.bf16.msra.mxu0 0
  %546 = vmatpush.bf16.msra.mxu0 0
  %547 = vmatpush.bf16.msra.mxu0 0
  %548 = vmatpush.bf16.msra.mxu0 %v540
  %549 = vmatmul.bf16.gmra.mxu0 %v409
  %v550 = vpop.f32.mrf.mxu0
  %v551 = vadd.f32 0.0, %v550
  %v552 = vpop.f32.mrf.mxu0
  %v553 = vadd.f32 0.0, %v552
  %554 = vdwg.mxu0
  %v555 = vpack.c.bf16 %v385, %v384
  %556 = vmatpush.bf16.msra.mxu0 0
  %557 = vmatpush.bf16.msra.mxu0 0
  %558 = vmatpush.bf16.msra.mxu0 0
  %559 = vmatpush.bf16.msra.mxu0 0
  %560 = vmatpush.bf16.msra.mxu0 0
  %561 = vmatpush.bf16.msra.mxu0 0
  %562 = vmatpush.bf16.msra.mxu0 0
  %563 = vmatpush.bf16.msra.mxu0 %v555
  %564 = vmatmul.bf16.gmra.mxu0 %v432
  %v565 = vpop.f32.mrf.mxu0
  %v566 = vadd.f32 0.0, %v565
  %v567 = vpop.f32.mrf.mxu0
  %v568 = vadd.f32 0.0, %v567
  %569 = vdwg.mxu0
  %v570 = vsub.f32 %v551, %v566
  %v571 = vsub.f32 %v553, %v568
  %572 = vst.msk [vmem:[%s8 + $0x20] sm:$0xff] %vm80, %v570
  %573 = vst.msk [vmem:[%s8 + $0x28] sm:$0xff] %vm80, %v571
  %v574 = vadd.f32 %v551, %v566
  %v575 = vadd.f32 %v553, %v568
  %v576 = vadd.f32 %v247, %v384
  %v577 = vadd.f32 %v248, %v385
  %v578 = vpack.c.bf16 %v577, %v576
  %579 = vmatpush.bf16.msra.mxu0 0
  %580 = vmatpush.bf16.msra.mxu0 0
  %581 = vmatpush.bf16.msra.mxu0 0
  %582 = vmatpush.bf16.msra.mxu0 0
  %583 = vmatpush.bf16.msra.mxu0 0
  %584 = vmatpush.bf16.msra.mxu0 0
  %585 = vmatpush.bf16.msra.mxu0 0
  %586 = vmatpush.bf16.msra.mxu0 %v578
  %587 = vmatmul.bf16.gmra.mxu0 %v463
  %v588 = vpop.f32.mrf.mxu0
  %v589 = vadd.f32 0.0, %v588
  %v590 = vpop.f32.mrf.mxu0
  %v591 = vadd.f32 0.0, %v590
  %592 = vdwg.mxu0
  %v593 = vsub.f32 %v589, %v574
  %v594 = vsub.f32 %v591, %v575
  %595 = vst.msk [vmem:[%s9 + $0x20] sm:$0xff] %vm80, %v593
  %596 = vst.msk [vmem:[%s9 + $0x28] sm:$0xff] %vm80, %v594
  %v597 = vpack.c.bf16 %v250, %v249
  %598 = vmatpush.bf16.msra.mxu0 0
  %599 = vmatpush.bf16.msra.mxu0 0
  %600 = vmatpush.bf16.msra.mxu0 0
  %601 = vmatpush.bf16.msra.mxu0 0
  %602 = vmatpush.bf16.msra.mxu0 0
  %603 = vmatpush.bf16.msra.mxu0 0
  %604 = vmatpush.bf16.msra.mxu0 0
  %605 = vmatpush.bf16.msra.mxu0 %v597
  %606 = vmatmul.bf16.gmra.mxu0 %v409
  %v607 = vpop.f32.mrf.mxu0
  %v608 = vadd.f32 0.0, %v607
  %v609 = vpop.f32.mrf.mxu0
  %v610 = vadd.f32 0.0, %v609
  %611 = vdwg.mxu0
  %v612 = vpack.c.bf16 %v387, %v386
  %613 = vmatpush.bf16.msra.mxu0 0
  %614 = vmatpush.bf16.msra.mxu0 0
  %615 = vmatpush.bf16.msra.mxu0 0
  %616 = vmatpush.bf16.msra.mxu0 0
  %617 = vmatpush.bf16.msra.mxu0 0
  %618 = vmatpush.bf16.msra.mxu0 0
  %619 = vmatpush.bf16.msra.mxu0 0
  %620 = vmatpush.bf16.msra.mxu0 %v612
  %621 = vmatmul.bf16.gmra.mxu0 %v432
  %v622 = vpop.f32.mrf.mxu0
  %v623 = vadd.f32 0.0, %v622
  %v624 = vpop.f32.mrf.mxu0
  %v625 = vadd.f32 0.0, %v624
  %626 = vdwg.mxu0
  %v627 = vsub.f32 %v608, %v623
  %v628 = vsub.f32 %v610, %v625
  %629 = vst.msk [vmem:[%s8 + $0x30] sm:$0xff] %vm80, %v627
  %630 = vst.msk [vmem:[%s8 + $0x38] sm:$0xff] %vm80, %v628
  %v631 = vadd.f32 %v608, %v623
  %v632 = vadd.f32 %v610, %v625
  %v633 = vadd.f32 %v249, %v386
  %v634 = vadd.f32 %v250, %v387
  %v635 = vpack.c.bf16 %v634, %v633
  %636 = vmatpush.bf16.msra.mxu0 0
  %637 = vmatpush.bf16.msra.mxu0 0
  %638 = vmatpush.bf16.msra.mxu0 0
  %639 = vmatpush.bf16.msra.mxu0 0
  %640 = vmatpush.bf16.msra.mxu0 0
  %641 = vmatpush.bf16.msra.mxu0 0
  %642 = vmatpush.bf16.msra.mxu0 0
  %643 = vmatpush.bf16.msra.mxu0 %v635
  %644 = vmatmul.bf16.gmra.mxu0 %v463
  %v645 = vpop.f32.mrf.mxu0
  %v646 = vadd.f32 0.0, %v645
  %v647 = vpop.f32.mrf.mxu0
  %v648 = vadd.f32 0.0, %v647
  %649 = vdwg.mxu0
  %v650 = vsub.f32 %v646, %v631
  %v651 = vsub.f32 %v648, %v632
  %652 = vst.msk [vmem:[%s9 + $0x30] sm:$0xff] %vm80, %v650
  %653 = vst.msk [vmem:[%s9 + $0x38] sm:$0xff] %vm80, %v651
  %v654 = vpack.c.bf16 %v252, %v251
  %655 = vmatpush.bf16.msra.mxu0 0
  %656 = vmatpush.bf16.msra.mxu0 0
  %657 = vmatpush.bf16.msra.mxu0 0
  %658 = vmatpush.bf16.msra.mxu0 0
  %659 = vmatpush.bf16.msra.mxu0 0
  %660 = vmatpush.bf16.msra.mxu0 0
  %661 = vmatpush.bf16.msra.mxu0 0
  %662 = vmatpush.bf16.msra.mxu0 %v654
  %663 = vmatmul.bf16.gmra.mxu0 %v409
  %v664 = vpop.f32.mrf.mxu0
  %v665 = vadd.f32 0.0, %v664
  %v666 = vpop.f32.mrf.mxu0
  %v667 = vadd.f32 0.0, %v666
  %668 = vdwg.mxu0
  %v669 = vpack.c.bf16 %v389, %v388
  %670 = vmatpush.bf16.msra.mxu0 0
  %671 = vmatpush.bf16.msra.mxu0 0
  %672 = vmatpush.bf16.msra.mxu0 0
  %673 = vmatpush.bf16.msra.mxu0 0
  %674 = vmatpush.bf16.msra.mxu0 0
  %675 = vmatpush.bf16.msra.mxu0 0
  %676 = vmatpush.bf16.msra.mxu0 0
  %677 = vmatpush.bf16.msra.mxu0 %v669
  %678 = vmatmul.bf16.gmra.mxu0 %v432
  %v679 = vpop.f32.mrf.mxu0
  %v680 = vadd.f32 0.0, %v679
  %v681 = vpop.f32.mrf.mxu0
  %v682 = vadd.f32 0.0, %v681
  %683 = vdwg.mxu0
  %v684 = vsub.f32 %v665, %v680
  %v685 = vsub.f32 %v667, %v682
  %686 = vst.msk [vmem:[%s8 + $0x40] sm:$0xff] %vm80, %v684
  %687 = vst.msk [vmem:[%s8 + $0x48] sm:$0xff] %vm80, %v685
  %v688 = vadd.f32 %v665, %v680
  %v689 = vadd.f32 %v667, %v682
  %v690 = vadd.f32 %v251, %v388
  %v691 = vadd.f32 %v252, %v389
  %v692 = vpack.c.bf16 %v691, %v690
  %693 = vmatpush.bf16.msra.mxu0 0
  %694 = vmatpush.bf16.msra.mxu0 0
  %695 = vmatpush.bf16.msra.mxu0 0
  %696 = vmatpush.bf16.msra.mxu0 0
  %697 = vmatpush.bf16.msra.mxu0 0
  %698 = vmatpush.bf16.msra.mxu0 0
  %699 = vmatpush.bf16.msra.mxu0 0
  %700 = vmatpush.bf16.msra.mxu0 %v692
  %701 = vmatmul.bf16.gmra.mxu0 %v463
  %v702 = vpop.f32.mrf.mxu0
  %v703 = vadd.f32 0.0, %v702
  %v704 = vpop.f32.mrf.mxu0
  %v705 = vadd.f32 0.0, %v704
  %706 = vdwg.mxu0
  %v707 = vsub.f32 %v703, %v688
  %v708 = vsub.f32 %v705, %v689
  %709 = vst.msk [vmem:[%s9 + $0x40] sm:$0xff] %vm80, %v707
  %710 = vst.msk [vmem:[%s9 + $0x48] sm:$0xff] %vm80, %v708
  %v711 = vpack.c.bf16 %v254, %v253
  %712 = vmatpush.bf16.msra.mxu0 0
  %713 = vmatpush.bf16.msra.mxu0 0
  %714 = vmatpush.bf16.msra.mxu0 0
  %715 = vmatpush.bf16.msra.mxu0 0
  %716 = vmatpush.bf16.msra.mxu0 0
  %717 = vmatpush.bf16.msra.mxu0 0
  %718 = vmatpush.bf16.msra.mxu0 0
  %719 = vmatpush.bf16.msra.mxu0 %v711
  %720 = vmatmul.bf16.gmra.mxu0 %v409
  %v721 = vpop.f32.mrf.mxu0
  %v722 = vadd.f32 0.0, %v721
  %v723 = vpop.f32.mrf.mxu0
  %v724 = vadd.f32 0.0, %v723
  %725 = vdwg.mxu0
  %v726 = vpack.c.bf16 %v391, %v390
  %727 = vmatpush.bf16.msra.mxu0 0
  %728 = vmatpush.bf16.msra.mxu0 0
  %729 = vmatpush.bf16.msra.mxu0 0
  %730 = vmatpush.bf16.msra.mxu0 0
  %731 = vmatpush.bf16.msra.mxu0 0
  %732 = vmatpush.bf16.msra.mxu0 0
  %733 = vmatpush.bf16.msra.mxu0 0
  %734 = vmatpush.bf16.msra.mxu0 %v726
  %735 = vmatmul.bf16.gmra.mxu0 %v432
  %v736 = vpop.f32.mrf.mxu0
  %v737 = vadd.f32 0.0, %v736
  %v738 = vpop.f32.mrf.mxu0
  %v739 = vadd.f32 0.0, %v738
  %740 = vdwg.mxu0
  %v741 = vsub.f32 %v722, %v737
  %v742 = vsub.f32 %v724, %v739
  %743 = vst.msk [vmem:[%s8 + $0x50] sm:$0xff] %vm80, %v741
  %744 = vst.msk [vmem:[%s8 + $0x58] sm:$0xff] %vm80, %v742
  %v745 = vadd.f32 %v722, %v737
  %v746 = vadd.f32 %v724, %v739
  %v747 = vadd.f32 %v253, %v390
  %v748 = vadd.f32 %v254, %v391
  %v749 = vpack.c.bf16 %v748, %v747
  %750 = vmatpush.bf16.msra.mxu0 0
  %751 = vmatpush.bf16.msra.mxu0 0
  %752 = vmatpush.bf16.msra.mxu0 0
  %753 = vmatpush.bf16.msra.mxu0 0
  %754 = vmatpush.bf16.msra.mxu0 0
  %755 = vmatpush.bf16.msra.mxu0 0
  %756 = vmatpush.bf16.msra.mxu0 0
  %757 = vmatpush.bf16.msra.mxu0 %v749
  %758 = vmatmul.bf16.gmra.mxu0 %v463
  %v759 = vpop.f32.mrf.mxu0
  %v760 = vadd.f32 0.0, %v759
  %v761 = vpop.f32.mrf.mxu0
  %v762 = vadd.f32 0.0, %v761
  %763 = vdwg.mxu0
  %v764 = vsub.f32 %v760, %v745
  %v765 = vsub.f32 %v762, %v746
  %766 = vst.msk [vmem:[%s9 + $0x50] sm:$0xff] %vm80, %v764
  %767 = vst.msk [vmem:[%s9 + $0x58] sm:$0xff] %vm80, %v765
  %v768 = vpack.c.bf16 %v256, %v255
  %769 = vmatpush.bf16.msra.mxu0 0
  %770 = vmatpush.bf16.msra.mxu0 0
  %771 = vmatpush.bf16.msra.mxu0 0
  %772 = vmatpush.bf16.msra.mxu0 0
  %773 = vmatpush.bf16.msra.mxu0 0
  %774 = vmatpush.bf16.msra.mxu0 0
  %775 = vmatpush.bf16.msra.mxu0 0
  %776 = vmatpush.bf16.msra.mxu0 %v768
  %777 = vmatmul.bf16.gmra.mxu0 %v409
  %v778 = vpop.f32.mrf.mxu0
  %v779 = vadd.f32 0.0, %v778
  %v780 = vpop.f32.mrf.mxu0
  %v781 = vadd.f32 0.0, %v780
  %782 = vdwg.mxu0
  %v783 = vpack.c.bf16 %v393, %v392
  %784 = vmatpush.bf16.msra.mxu0 0
  %785 = vmatpush.bf16.msra.mxu0 0
  %786 = vmatpush.bf16.msra.mxu0 0
  %787 = vmatpush.bf16.msra.mxu0 0
  %788 = vmatpush.bf16.msra.mxu0 0
  %789 = vmatpush.bf16.msra.mxu0 0
  %790 = vmatpush.bf16.msra.mxu0 0
  %791 = vmatpush.bf16.msra.mxu0 %v783
  %792 = vmatmul.bf16.gmra.mxu0 %v432
  %v793 = vpop.f32.mrf.mxu0
  %v794 = vadd.f32 0.0, %v793
  %v795 = vpop.f32.mrf.mxu0
  %v796 = vadd.f32 0.0, %v795
  %797 = vdwg.mxu0
  %v798 = vsub.f32 %v779, %v794
  %v799 = vsub.f32 %v781, %v796
  %800 = vst.msk [vmem:[%s8 + $0x60] sm:$0xff] %vm80, %v798
  %801 = vst.msk [vmem:[%s8 + $0x68] sm:$0xff] %vm80, %v799
  %v802 = vadd.f32 %v779, %v794
  %v803 = vadd.f32 %v781, %v796
  %v804 = vadd.f32 %v255, %v392
  %v805 = vadd.f32 %v256, %v393
  %v806 = vpack.c.bf16 %v805, %v804
  %807 = vmatpush.bf16.msra.mxu0 0
  %808 = vmatpush.bf16.msra.mxu0 0
  %809 = vmatpush.bf16.msra.mxu0 0
  %810 = vmatpush.bf16.msra.mxu0 0
  %811 = vmatpush.bf16.msra.mxu0 0
  %812 = vmatpush.bf16.msra.mxu0 0
  %813 = vmatpush.bf16.msra.mxu0 0
  %814 = vmatpush.bf16.msra.mxu0 %v806
  %815 = vmatmul.bf16.gmra.mxu0 %v463
  %v816 = vpop.f32.mrf.mxu0
  %v817 = vadd.f32 0.0, %v816
  %v818 = vpop.f32.mrf.mxu0
  %v819 = vadd.f32 0.0, %v818
  %820 = vdwg.mxu0
  %v821 = vsub.f32 %v817, %v802
  %v822 = vsub.f32 %v819, %v803
  %823 = vst.msk [vmem:[%s9 + $0x60] sm:$0xff] %vm80, %v821
  %824 = vst.msk [vmem:[%s9 + $0x68] sm:$0xff] %vm80, %v822
  %v825 = vpack.c.bf16 %v258, %v257
  %826 = vmatpush.bf16.msra.mxu0 0
  %827 = vmatpush.bf16.msra.mxu0 0
  %828 = vmatpush.bf16.msra.mxu0 0
  %829 = vmatpush.bf16.msra.mxu0 0
  %830 = vmatpush.bf16.msra.mxu0 0
  %831 = vmatpush.bf16.msra.mxu0 0
  %832 = vmatpush.bf16.msra.mxu0 0
  %833 = vmatpush.bf16.msra.mxu0 %v825
  %834 = vmatmul.bf16.gmra.mxu0 %v409
  %v835 = vpop.f32.mrf.mxu0
  %v836 = vadd.f32 0.0, %v835
  %v837 = vpop.f32.mrf.mxu0
  %v838 = vadd.f32 0.0, %v837
  %839 = vdwg.mxu0
  %v840 = vpack.c.bf16 %v395, %v394
  %841 = vmatpush.bf16.msra.mxu0 0
  %842 = vmatpush.bf16.msra.mxu0 0
  %843 = vmatpush.bf16.msra.mxu0 0
  %844 = vmatpush.bf16.msra.mxu0 0
  %845 = vmatpush.bf16.msra.mxu0 0
  %846 = vmatpush.bf16.msra.mxu0 0
  %847 = vmatpush.bf16.msra.mxu0 0
  %848 = vmatpush.bf16.msra.mxu0 %v840
  %849 = vmatmul.bf16.gmra.mxu0 %v432
  %v850 = vpop.f32.mrf.mxu0
  %v851 = vadd.f32 0.0, %v850
  %v852 = vpop.f32.mrf.mxu0
  %v853 = vadd.f32 0.0, %v852
  %854 = vdwg.mxu0
  %v855 = vsub.f32 %v836, %v851
  %v856 = vsub.f32 %v838, %v853
  %857 = vst.msk [vmem:[%s8 + $0x70] sm:$0xff] %vm80, %v855
  %858 = vst.msk [vmem:[%s8 + $0x78] sm:$0xff] %vm80, %v856
  %v859 = vadd.f32 %v836, %v851
  %v860 = vadd.f32 %v838, %v853
  %v861 = vadd.f32 %v257, %v394
  %v862 = vadd.f32 %v258, %v395
  %v863 = vpack.c.bf16 %v862, %v861
  %864 = vmatpush.bf16.msra.mxu0 0
  %865 = vmatpush.bf16.msra.mxu0 0
  %866 = vmatpush.bf16.msra.mxu0 0
  %867 = vmatpush.bf16.msra.mxu0 0
  %868 = vmatpush.bf16.msra.mxu0 0
  %869 = vmatpush.bf16.msra.mxu0 0
  %870 = vmatpush.bf16.msra.mxu0 0
  %871 = vmatpush.bf16.msra.mxu0 %v863
  %872 = vmatmul.bf16.gmra.mxu0 %v463
  %v873 = vpop.f32.mrf.mxu0
  %v874 = vadd.f32 0.0, %v873
  %v875 = vpop.f32.mrf.mxu0
  %v876 = vadd.f32 0.0, %v875
  %877 = vdwg.mxu0
  %v878 = vsub.f32 %v874, %v859
  %v879 = vsub.f32 %v876, %v860
  %880 = vst.msk [vmem:[%s9 + $0x70] sm:$0xff] %vm80, %v878
  %881 = vst.msk [vmem:[%s9 + $0x78] sm:$0xff] %vm80, %v879
  // Predicated region
  $region34: #{tpu_custom_call.1} parent=0 // pred_check
    _
  $region35: #{tpu_custom_call.1} parent=0 // pred_check_branch
    %883 = sbr.rel (0) target = $region37
  $region36: #{tpu_custom_call.1} parent=0 // pred_region
    _
  $region37: #{tpu_custom_call.1} parent=0 // pred_fallthru
    _
  // Predicated region
  $region38: #{tpu_custom_call.1} parent=0 // pred_check
    _
  $region39: #{tpu_custom_call.1} parent=0 // pred_check_branch
    %885 = sbr.rel (0) target = $region41
  $region40: #{tpu_custom_call.1} parent=0 // pred_region
    _
  $region41: #{tpu_custom_call.1} parent=0 // pred_fallthru
    _
  // Predicated region
  $region42: #{tpu_custom_call.1} parent=0 // pred_check
    _
  $region43: #{tpu_custom_call.1} parent=0 // pred_check_branch
    %887 = sbr.rel (0) target = $region45
  $region44: #{tpu_custom_call.1} parent=0 // pred_region
    _
  $region45: #{tpu_custom_call.1} parent=0 // pred_fallthru
    _
  // Predicated region
  $region46: #{tpu_custom_call.1} parent=0 // pred_check
    _
  $region47: #{tpu_custom_call.1} parent=0 // pred_check_branch
    %889 = sbr.rel (0) target = $region49
  $region48: #{tpu_custom_call.1} parent=0 // pred_region
    _
  $region49: #{tpu_custom_call.1} parent=0 // pred_fallthru
    _

</llo_original>
